<compile_context>
chip_gen: v7x
topology: tpu7x:2x2x1
jax: 0.10.0
libtpu: 0.0.40
codegen_flags: <defaults>
</compile_context>

<pallas_src>
import jax
import jax.numpy as jnp
from jax.experimental import pallas as pl
from jax.experimental.pallas import tpu as pltpu

# ---- synthetic stand-in for hash.json (tcnn-style config) --------------------
# TODO(synk): real module reads hash.json + uses tcnn; these values are a
# representative stand-in (HashGrid 8 levels x 2 feats, MLP 32 neurons x 2).
N_LEVELS = 8          # encoding: n_levels
N_FEATS = 2           # encoding: n_features_per_level
LOG2_T = 12           # encoding: log2_hashmap_size
T = 1 << LOG2_T
BASE_RES = 4          # encoding: base_resolution
PER_LEVEL_SCALE = 1.5 # encoding: per_level_scale
HIDDEN = 32           # network: n_neurons (2 hidden layers, ReLU, linear out)
ENC_OUT = N_LEVELS * N_FEATS
D_IN = 2 + ENC_OUT    # decoder input = cat([x, encoder(x)], dim=1)
D_OUT = 3


def _round_up(a, b):
    return ((a + b - 1) // b) * b


# ---- hash-grid encoding (plain JAX glue: gather + bilinear interp) -----------
# TODO(synk): fuse this gather/interp into the Pallas kernel (the 8x4096x2 f32
# tables are only 256 KiB and fit VMEM on every generation, incl. v7x's 64 MiB);
# kept as XLA glue because Mosaic's in-kernel gather from a 4096-deep table is
# not guaranteed to lower cleanly on all toolchains.
def hash_encode(x, tables):
    """x: (N, 2) float32 in [0,1]; tables: (N_LEVELS, T, N_FEATS) -> (N, ENC_OUT)."""
    # TODO(synk): tcnn uses dense (non-hashed) indexing when a level fits the
    # table; this synthetic version hashes every level with the tcnn primes.
    prime0 = jnp.uint32(1)
    prime1 = jnp.uint32(2654435761)
    feats = []
    for l in range(N_LEVELS):
        res = int(BASE_RES * (PER_LEVEL_SCALE ** l))
        pos = x * res
        p0 = jnp.floor(pos)
        w = pos - p0                      # (N, 2) bilinear weights
        p0u = p0.astype(jnp.uint32)
        lvl = jnp.zeros((x.shape[0], N_FEATS), jnp.float32)
        for dx in (0, 1):
            for dy in (0, 1):
                cx = p0u[:, 0] + jnp.uint32(dx)
                cy = p0u[:, 1] + jnp.uint32(dy)
                h = (cx * prime0) ^ (cy * prime1)
                idx = (h & jnp.uint32(T - 1)).astype(jnp.int32)
                f = tables[l][idx]                      # (N, N_FEATS) gather
                wx = w[:, 0] if dx == 1 else 1.0 - w[:, 0]
                wy = w[:, 1] if dy == 1 else 1.0 - w[:, 1]
                lvl = lvl + f * (wx * wy)[:, None]
        feats.append(lvl)
    return jnp.concatenate(feats, axis=1)


# ---- Pallas kernel: fused MLP decoder, points-on-lanes (lane-dense) ----------
def mlp_kernel(xT_ref, w1_ref, b1_ref, w2_ref, b2_ref, w3_ref, b3_ref, oT_ref):
    # xT: (D_IN, tm) bf16, weights W^T bf16, biases f32 (H,1), output (D_OUT, tm) f32.
    # Dots accumulate in f32 on the MXU; bias/ReLU stay f32 (v5e-safe), casts to
    # bf16 only to feed the next MXU pass.
    h = jnp.dot(w1_ref[...], xT_ref[...], preferred_element_type=jnp.float32)
    h = jnp.maximum(h + b1_ref[...], 0.0)
    h = jnp.dot(w2_ref[...], h.astype(w2_ref.dtype),
                preferred_element_type=jnp.float32)
    h = jnp.maximum(h + b2_ref[...], 0.0)
    o = jnp.dot(w3_ref[...], h.astype(w3_ref.dtype),
                preferred_element_type=jnp.float32) + b3_ref[...]
    oT_ref[...] = o.astype(oT_ref.dtype)


def mlp_decoder(feat, w1, b1, w2, b2, w3, b3, *, tm_max=2048):
    """feat: (N, D_IN) f32 -> (N, D_OUT) f32 via fused 2-hidden-layer ReLU MLP."""
    N, D = feat.shape
    H = w1.shape[1]
    O = w3.shape[1]

    # Lane tile: as large as possible (per-grid-step overhead ~0.35us dominates
    # tiny tiles), but keep the grid >= 2 when N allows so v7x megacore shards
    # across both TensorCores.  Always a multiple of 128 (unmasked lanes).
    tm = min(tm_max, _round_up(max((N + 1) // 2, 128), 128))
    n_pad = _round_up(N, tm)               # pad instead of asserting N % tm == 0
    grid = n_pad // tm

    # Points-on-lanes layout + bf16 MXU inputs (layout plumbing in the wrapper).
    featT = jnp.pad(feat.T.astype(jnp.bfloat16), ((0, 0), (0, n_pad - N)))
    w1T = w1.T.astype(jnp.bfloat16)
    w2T = w2.T.astype(jnp.bfloat16)
    w3T = w3.T.astype(jnp.bfloat16)
    b1c = b1.reshape(H, 1).astype(jnp.float32)
    b2c = b2.reshape(H, 1).astype(jnp.float32)
    b3c = b3.reshape(O, 1).astype(jnp.float32)

    cost = pl.CostEstimate(
        flops=2 * n_pad * (D * H + H * H + H * O),
        transcendentals=0,
        bytes_accessed=(featT.size * 2 + n_pad * O * 4
                        + (D * H + H * H + H * O) * 2 + (2 * H + O) * 4),
    )

    outT = pl.pallas_call(
        mlp_kernel,
        out_shape=jax.ShapeDtypeStruct((O, n_pad), jnp.float32),
        grid_spec=pltpu.PrefetchScalarGridSpec(
            num_scalar_prefetch=0,
            grid=(grid,),
            in_specs=[
                pl.BlockSpec((D, tm), lambda i: (0, i)),   # point tile, lane-dense
                pl.BlockSpec((H, D), lambda i: (0, 0)),    # W1^T (resident)
                pl.BlockSpec((H, 1), lambda i: (0, 0)),    # b1
                pl.BlockSpec((H, H), lambda i: (0, 0)),    # W2^T
                pl.BlockSpec((H, 1), lambda i: (0, 0)),    # b2
                pl.BlockSpec((O, H), lambda i: (0, 0)),    # W3^T
                pl.BlockSpec((O, 1), lambda i: (0, 0)),    # b3
            ],
            out_specs=pl.BlockSpec((O, tm), lambda i: (0, i)),  # lane-dense output
        ),
        compiler_params=pltpu.CompilerParams(
            dimension_semantics=("parallel",)),
        cost_estimate=cost,
    )(featT, w1T, b1c, w2T, b2c, w3T, b3c)

    return outT[:, :N].T                                   # back to (N, 3)


# ---- full forward: encoder -> concat -> Pallas decoder -----------------------
def grid2rgb_forward(x, params):
    tables, w1, b1, w2, b2, w3, b3 = params
    enc = hash_encode(x, tables)                       # (N, ENC_OUT)
    feat = jnp.concatenate([x, enc], axis=1)           # == torch.cat([x, enc], dim=1)
    return mlp_decoder(feat, w1, b1, w2, b2, w3, b3)   # (N, 3)


def init_params(key):
    k_t, k1, k2, k3 = jax.random.split(key, 4)
    # tcnn-style hash table init: U(-1e-4, 1e-4)
    tables = jax.random.uniform(k_t, (N_LEVELS, T, N_FEATS),
                                minval=-1e-4, maxval=1e-4, dtype=jnp.float32)
    w1 = jax.random.normal(k1, (D_IN, HIDDEN), jnp.float32) / jnp.sqrt(D_IN)
    b1 = jnp.zeros((1, HIDDEN), jnp.float32)
    w2 = jax.random.normal(k2, (HIDDEN, HIDDEN), jnp.float32) / jnp.sqrt(HIDDEN)
    b2 = jnp.zeros((1, HIDDEN), jnp.float32)
    w3 = jax.random.normal(k3, (HIDDEN, D_OUT), jnp.float32) / jnp.sqrt(HIDDEN)
    b3 = jnp.zeros((1, D_OUT), jnp.float32)
    return (tables, w1, b1, w2, b2, w3, b3)


if __name__ == "__main__":
    key = jax.random.PRNGKey(0)
    k_x, k_p = jax.random.split(key)
    N = 256                                   # number of 2-D query points
    x = jax.random.uniform(k_x, (N, 2), dtype=jnp.float32)   # coords in [0,1]^2
    params = init_params(k_p)

    out = jax.jit(grid2rgb_forward)(x, params)
    out = jax.block_until_ready(out)
    assert out.shape == (N, 3) and out.dtype == jnp.float32
    assert bool(jnp.all(jnp.isfinite(out)))
    print("KERNEL_OK")
</pallas_src>

<mosaic_0001>
module attributes {stable_mosaic.version = 11 : i64} {
  func.func @mlp_kernel(%arg0: i32, %arg1: memref<18x128xbf16, #tpu.memory_space<vmem>>, %arg2: memref<32x18xbf16, #tpu.memory_space<vmem>>, %arg3: memref<32x1xf32, #tpu.memory_space<vmem>>, %arg4: memref<32x32xbf16, #tpu.memory_space<vmem>>, %arg5: memref<32x1xf32, #tpu.memory_space<vmem>>, %arg6: memref<3x32xbf16, #tpu.memory_space<vmem>>, %arg7: memref<3x1xf32, #tpu.memory_space<vmem>>, %arg8: memref<3x128xf32, #tpu.memory_space<vmem>>) attributes {dimension_semantics = [#tpu.dimension_semantics<parallel>], iteration_bounds = array<i64: 2>, scalar_prefetch = 0 : i64, scratch_operands = 0 : i64, tpu.core_type = #tpu.core_type<tc>, window_params = [{transform_indices = @transform_0, window_bounds = array<i64: 18, 128>}, {pipeline_mode = #tpu.pipeline_mode<synchronous>, transform_indices = @transform_1, window_bounds = array<i64: 32, 18>}, {pipeline_mode = #tpu.pipeline_mode<synchronous>, transform_indices = @transform_2, window_bounds = array<i64: 32, 1>}, {pipeline_mode = #tpu.pipeline_mode<synchronous>, transform_indices = @transform_3, window_bounds = array<i64: 32, 32>}, {pipeline_mode = #tpu.pipeline_mode<synchronous>, transform_indices = @transform_4, window_bounds = array<i64: 32, 1>}, {pipeline_mode = #tpu.pipeline_mode<synchronous>, transform_indices = @transform_5, window_bounds = array<i64: 3, 32>}, {pipeline_mode = #tpu.pipeline_mode<synchronous>, transform_indices = @transform_6, window_bounds = array<i64: 3, 1>}, {transform_indices = @transform_7, window_bounds = array<i64: 3, 128>}]} {
    %c0 = arith.constant 0 : index
    %c0_0 = arith.constant 0 : index
    %0 = vector.load %arg2[%c0, %c0_0] : memref<32x18xbf16, #tpu.memory_space<vmem>>, vector<32x18xbf16>
    %c0_1 = arith.constant 0 : index
    %c0_2 = arith.constant 0 : index
    %1 = vector.load %arg1[%c0_1, %c0_2] : memref<18x128xbf16, #tpu.memory_space<vmem>>, vector<18x128xbf16>
    %cst = arith.constant dense<0.000000e+00> : vector<32x128xf32>
    %2 = tpu.matmul %0, %1, %cst {dimension_numbers = #tpu.dot_dimension_numbers<[1], [0], [0], [1], [0, 0, 1, 1], [], []>} : vector<32x18xbf16>, vector<18x128xbf16>, vector<32x128xf32> -> vector<32x128xf32>
    %c0_3 = arith.constant 0 : index
    %c0_4 = arith.constant 0 : index
    %3 = vector.load %arg3[%c0_3, %c0_4] : memref<32x1xf32, #tpu.memory_space<vmem>>, vector<32x1xf32>
    %4 = vector.broadcast %3 : vector<32x1xf32> to vector<32x128xf32>
    %5 = arith.addf %2, %4 : vector<32x128xf32>
    %cst_5 = arith.constant 0.000000e+00 : f32
    %6 = vector.broadcast %cst_5 : f32 to vector<32x128xf32>
    %7 = arith.maximumf %5, %6 : vector<32x128xf32>
    %c0_6 = arith.constant 0 : index
    %c0_7 = arith.constant 0 : index
    %8 = vector.load %arg4[%c0_6, %c0_7] : memref<32x32xbf16, #tpu.memory_space<vmem>>, vector<32x32xbf16>
    %9 = arith.truncf %7 : vector<32x128xf32> to vector<32x128xbf16>
    %cst_8 = arith.constant dense<0.000000e+00> : vector<32x128xf32>
    %10 = tpu.matmul %8, %9, %cst_8 {dimension_numbers = #tpu.dot_dimension_numbers<[1], [0], [0], [1], [0, 0, 1, 1], [], []>} : vector<32x32xbf16>, vector<32x128xbf16>, vector<32x128xf32> -> vector<32x128xf32>
    %c0_9 = arith.constant 0 : index
    %c0_10 = arith.constant 0 : index
    %11 = vector.load %arg5[%c0_9, %c0_10] : memref<32x1xf32, #tpu.memory_space<vmem>>, vector<32x1xf32>
    %12 = vector.broadcast %11 : vector<32x1xf32> to vector<32x128xf32>
    %13 = arith.addf %10, %12 : vector<32x128xf32>
    %cst_11 = arith.constant 0.000000e+00 : f32
    %14 = vector.broadcast %cst_11 : f32 to vector<32x128xf32>
    %15 = arith.maximumf %13, %14 : vector<32x128xf32>
    %c0_12 = arith.constant 0 : index
    %c0_13 = arith.constant 0 : index
    %16 = vector.load %arg6[%c0_12, %c0_13] : memref<3x32xbf16, #tpu.memory_space<vmem>>, vector<3x32xbf16>
    %17 = arith.truncf %15 : vector<32x128xf32> to vector<32x128xbf16>
    %cst_14 = arith.constant dense<0.000000e+00> : vector<3x128xf32>
    %18 = tpu.matmul %16, %17, %cst_14 {dimension_numbers = #tpu.dot_dimension_numbers<[1], [0], [0], [1], [0, 0, 1, 1], [], []>} : vector<3x32xbf16>, vector<32x128xbf16>, vector<3x128xf32> -> vector<3x128xf32>
    %c0_15 = arith.constant 0 : index
    %c0_16 = arith.constant 0 : index
    %19 = vector.load %arg7[%c0_15, %c0_16] : memref<3x1xf32, #tpu.memory_space<vmem>>, vector<3x1xf32>
    %20 = vector.broadcast %19 : vector<3x1xf32> to vector<3x128xf32>
    %21 = arith.addf %18, %20 : vector<3x128xf32>
    %c0_17 = arith.constant 0 : index
    %c0_18 = arith.constant 0 : index
    %22 = vector.load %arg8[%c0_17, %c0_18] : memref<3x128xf32, #tpu.memory_space<vmem>>, vector<3x128xf32>
    tpu.vector_store %arg8[%c0_17, %c0_18], %21 {strides = array<i32>} : memref<3x128xf32, #tpu.memory_space<vmem>>, vector<3x128xf32>,
    return
  }
  func.func @transform_0(%arg0: i32) -> (i32, i32) {
    %c0_i32 = arith.constant 0 : i32
    %c0_i32_0 = arith.constant 0 : i32
    return %c0_i32, %arg0 : i32, i32
  }
  func.func @transform_1(%arg0: i32) -> (i32, i32) {
    %c0_i32 = arith.constant 0 : i32
    %c0_i32_0 = arith.constant 0 : i32
    %c0_i32_1 = arith.constant 0 : i32
    return %c0_i32, %c0_i32_0 : i32, i32
  }
  func.func @transform_2(%arg0: i32) -> (i32, i32) {
    %c0_i32 = arith.constant 0 : i32
    %c0_i32_0 = arith.constant 0 : i32
    %c0_i32_1 = arith.constant 0 : i32
    return %c0_i32, %c0_i32_0 : i32, i32
  }
  func.func @transform_3(%arg0: i32) -> (i32, i32) {
    %c0_i32 = arith.constant 0 : i32
    %c0_i32_0 = arith.constant 0 : i32
    %c0_i32_1 = arith.constant 0 : i32
    return %c0_i32, %c0_i32_0 : i32, i32
  }
  func.func @transform_4(%arg0: i32) -> (i32, i32) {
    %c0_i32 = arith.constant 0 : i32
    %c0_i32_0 = arith.constant 0 : i32
    %c0_i32_1 = arith.constant 0 : i32
    return %c0_i32, %c0_i32_0 : i32, i32
  }
  func.func @transform_5(%arg0: i32) -> (i32, i32) {
    %c0_i32 = arith.constant 0 : i32
    %c0_i32_0 = arith.constant 0 : i32
    %c0_i32_1 = arith.constant 0 : i32
    return %c0_i32, %c0_i32_0 : i32, i32
  }
  func.func @transform_6(%arg0: i32) -> (i32, i32) {
    %c0_i32 = arith.constant 0 : i32
    %c0_i32_0 = arith.constant 0 : i32
    %c0_i32_1 = arith.constant 0 : i32
    return %c0_i32, %c0_i32_0 : i32, i32
  }
  func.func @transform_7(%arg0: i32) -> (i32, i32) {
    %c0_i32 = arith.constant 0 : i32
    %c0_i32_0 = arith.constant 0 : i32
    return %c0_i32, %arg0 : i32, i32
  }
}

</mosaic_0001>

<llo_original>
// kernel: grid2rgb_forward.1
$region0: #{grid2rgb_forward.1}
  #allocation0 [shape = 'u32[]', space=smem, size = 0x4, offset = 0x4, fixed_abs, tag = 'smem constant byte address 0x4 - core index']
  #allocation1 [shape = 'u32[144,128]{1,0:T(1,128)}', space=vmem, size = 0x12000, scoped, tag = 'internal scratch']
  %s0 = inlined_call_operand.vmem [shape: bf16[18,256], index: 0, kind: input, shape index: {}]
  %s1 = inlined_call_operand.vmem [shape: bf16[32,18], index: 1, kind: input, shape index: {}]
  %s2 = inlined_call_operand.vmem [shape: f32[32,1], index: 2, kind: input, shape index: {}]
  %s3 = inlined_call_operand.vmem [shape: bf16[32,32], index: 3, kind: input, shape index: {}]
  %s4 = inlined_call_operand.vmem [shape: f32[32,1], index: 4, kind: input, shape index: {}]
  %s5 = inlined_call_operand.vmem [shape: bf16[3,32], index: 5, kind: input, shape index: {}]
  %s6 = inlined_call_operand.vmem [shape: f32[3,1], index: 6, kind: input, shape index: {}]
  %s7 = inlined_call_operand.hbm [shape: f32[3,256], index: 7, kind: output, shape index: {}]
  %s8 = sld [smem:[#allocation0]]
  $region102: #{grid2rgb_forward.1} parent=0
    _
  %s10 = ssub.s32 1, %s8
  %s11 = scalar_select 0, %s10, %s8
  $region1: #{grid2rgb_forward.1} parent=0
    #allocation2 [shape = 'u8[12288]{0}', space=vmem, size = 0x3000, scoped, tag = 'input window, operand 0']
    #allocation3 [shape = 'u8[4096]{0}', space=vmem, size = 0x1000, scoped, tag = 'output window, operand 0']
    #allocation4 [shape = 's32[2]{0}', space=sflag, size = 0x8, scoped, tag = 'scoped memory for grid2rgb_forward.1']
    %12 = vsyncpa [#allocation4], 0
    %s13 = scalar_lea.sflag [#allocation4], 1
    %14 = vsyncpa %s13, 0
    loop: start=0, step=1, limit=4
    $region2: #{grid2rgb_forward.1} parent=1 // loop_pre_header
      _
    $region3: #{grid2rgb_forward.1} parent=1 // loop_header
      %s16 = sphi 0, %s20
      %p17 = scmp.ge.s32.totalorder %s16, 4
      %s26 = sphi 0, %s28
      %s29 = sphi 0, %s26
      %s30 = sphi 0, %s29
      %s46 = sphi 0, %s30
      %s50 = sphi 0, %s50
      %s52 = sphi 0, %s50
      %s53 = sphi 0, %s52
      %s67 = sphi 0, %s53
      %s71 = sphi 0, %s71
      %s73 = sphi 0, %s71
      %s74 = sphi 0, %s73
      %s88 = sphi 0, %s74
      %s92 = sphi 0, %s92
      %s94 = sphi 0, %s92
      %s95 = sphi 0, %s94
      %s109 = sphi 0, %s95
      %s113 = sphi 0, %s113
      %s115 = sphi 0, %s113
      %s116 = sphi 0, %s115
      %s130 = sphi 0, %s116
      %s134 = sphi 0, %s134
      %s136 = sphi 0, %s134
      %s137 = sphi 0, %s136
      %s151 = sphi 0, %s137
      %s155 = sphi 0, %s155
      %s157 = sphi 0, %s155
      %s158 = sphi 0, %s157
      %s172 = sphi 0, %s158
      %s178 = sphi 0, %s180
      %s181 = sphi 0, %s178
      %s182 = sphi 0, %s181
      %s198 = sphi 0, %s182
    $region4: #{grid2rgb_forward.1} parent=1 // loop_header_branch
      %19 = sbr.rel (%p17) target = $region8
    $region5: #{grid2rgb_forward.1} parent=1 // loop_body
      %s21 = ssub.s32 %s16, 1
      %s22 = ssub.s32 %s16, 2
      %s23 = sadd.s32 %s16, 1
      %s24 = ssub.s32 %s16, %s23
      %p25 = scmp.eq.s32.totalorder %s24, 0
      %s27 = sadd.s32 %s26, 1
      %s28 = scalar_select %p25, %s26, %s27
      %p31 = pneg %p25
      %p32 = scmp.eq.s32.totalorder %s16, 1
      %p33 = por %p31, %p32
      %p34 = scmp.ne.s32.totalorder %s26, %s29
      %p35 = scmp.eq.s32.totalorder %s16, 0
      %p36 = por %p34, %p35
      %p37 = scmp.ne.s32.totalorder %s26, %s29
      %p38 = scmp.eq.s32.totalorder %s21, 1
      %p39 = por %p37, %p38
      %p40 = scmp.ne.s32.totalorder %s29, %s30
      %p41 = scmp.eq.s32.totalorder %s21, 0
      %p42 = por %p40, %p41
      %p43 = scmp.ne.s32.totalorder %s29, %s30
      %p44 = scmp.eq.s32.totalorder %s22, 1
      %p45 = por %p43, %p44
      %p47 = scmp.ne.s32.totalorder %s30, %s46
      %p48 = scmp.eq.s32.totalorder %s22, 0
      %p49 = por %p47, %p48
      %s51 = sadd.s32 %s50, 1
      %p54 = scmp.eq.s32.totalorder %s16, 1
      %p55 = scmp.ne.s32.totalorder %s50, %s52
      %p56 = scmp.eq.s32.totalorder %s16, 0
      %p57 = por %p55, %p56
      %p58 = scmp.ne.s32.totalorder %s50, %s52
      %p59 = scmp.eq.s32.totalorder %s21, 1
      %p60 = por %p58, %p59
      %p61 = scmp.ne.s32.totalorder %s52, %s53
      %p62 = scmp.eq.s32.totalorder %s21, 0
      %p63 = por %p61, %p62
      %p64 = scmp.ne.s32.totalorder %s52, %s53
      %p65 = scmp.eq.s32.totalorder %s22, 1
      %p66 = por %p64, %p65
      %p68 = scmp.ne.s32.totalorder %s53, %s67
      %p69 = scmp.eq.s32.totalorder %s22, 0
      %p70 = por %p68, %p69
      %s72 = sadd.s32 %s71, 1
      %p75 = scmp.eq.s32.totalorder %s16, 1
      %p76 = scmp.ne.s32.totalorder %s71, %s73
      %p77 = scmp.eq.s32.totalorder %s16, 0
      %p78 = por %p76, %p77
      %p79 = scmp.ne.s32.totalorder %s71, %s73
      %p80 = scmp.eq.s32.totalorder %s21, 1
      %p81 = por %p79, %p80
      %p82 = scmp.ne.s32.totalorder %s73, %s74
      %p83 = scmp.eq.s32.totalorder %s21, 0
      %p84 = por %p82, %p83
      %p85 = scmp.ne.s32.totalorder %s73, %s74
      %p86 = scmp.eq.s32.totalorder %s22, 1
      %p87 = por %p85, %p86
      %p89 = scmp.ne.s32.totalorder %s74, %s88
      %p90 = scmp.eq.s32.totalorder %s22, 0
      %p91 = por %p89, %p90
      %s93 = sadd.s32 %s92, 1
      %p96 = scmp.eq.s32.totalorder %s16, 1
      %p97 = scmp.ne.s32.totalorder %s92, %s94
      %p98 = scmp.eq.s32.totalorder %s16, 0
      %p99 = por %p97, %p98
      %p100 = scmp.ne.s32.totalorder %s92, %s94
      %p101 = scmp.eq.s32.totalorder %s21, 1
      %p102 = por %p100, %p101
      %p103 = scmp.ne.s32.totalorder %s94, %s95
      %p104 = scmp.eq.s32.totalorder %s21, 0
      %p105 = por %p103, %p104
      %p106 = scmp.ne.s32.totalorder %s94, %s95
      %p107 = scmp.eq.s32.totalorder %s22, 1
      %p108 = por %p106, %p107
      %p110 = scmp.ne.s32.totalorder %s95, %s109
      %p111 = scmp.eq.s32.totalorder %s22, 0
      %p112 = por %p110, %p111
      %s114 = sadd.s32 %s113, 1
      %p117 = scmp.eq.s32.totalorder %s16, 1
      %p118 = scmp.ne.s32.totalorder %s113, %s115
      %p119 = scmp.eq.s32.totalorder %s16, 0
      %p120 = por %p118, %p119
      %p121 = scmp.ne.s32.totalorder %s113, %s115
      %p122 = scmp.eq.s32.totalorder %s21, 1
      %p123 = por %p121, %p122
      %p124 = scmp.ne.s32.totalorder %s115, %s116
      %p125 = scmp.eq.s32.totalorder %s21, 0
      %p126 = por %p124, %p125
      %p127 = scmp.ne.s32.totalorder %s115, %s116
      %p128 = scmp.eq.s32.totalorder %s22, 1
      %p129 = por %p127, %p128
      %p131 = scmp.ne.s32.totalorder %s116, %s130
      %p132 = scmp.eq.s32.totalorder %s22, 0
      %p133 = por %p131, %p132
      %s135 = sadd.s32 %s134, 1
      %p138 = scmp.eq.s32.totalorder %s16, 1
      %p139 = scmp.ne.s32.totalorder %s134, %s136
      %p140 = scmp.eq.s32.totalorder %s16, 0
      %p141 = por %p139, %p140
      %p142 = scmp.ne.s32.totalorder %s134, %s136
      %p143 = scmp.eq.s32.totalorder %s21, 1
      %p144 = por %p142, %p143
      %p145 = scmp.ne.s32.totalorder %s136, %s137
      %p146 = scmp.eq.s32.totalorder %s21, 0
      %p147 = por %p145, %p146
      %p148 = scmp.ne.s32.totalorder %s136, %s137
      %p149 = scmp.eq.s32.totalorder %s22, 1
      %p150 = por %p148, %p149
      %p152 = scmp.ne.s32.totalorder %s137, %s151
      %p153 = scmp.eq.s32.totalorder %s22, 0
      %p154 = por %p152, %p153
      %s156 = sadd.s32 %s155, 1
      %p159 = scmp.eq.s32.totalorder %s16, 1
      %p160 = scmp.ne.s32.totalorder %s155, %s157
      %p161 = scmp.eq.s32.totalorder %s16, 0
      %p162 = por %p160, %p161
      %p163 = scmp.ne.s32.totalorder %s155, %s157
      %p164 = scmp.eq.s32.totalorder %s21, 1
      %p165 = por %p163, %p164
      %p166 = scmp.ne.s32.totalorder %s157, %s158
      %p167 = scmp.eq.s32.totalorder %s21, 0
      %p168 = por %p166, %p167
      %p169 = scmp.ne.s32.totalorder %s157, %s158
      %p170 = scmp.eq.s32.totalorder %s22, 1
      %p171 = por %p169, %p170
      %p173 = scmp.ne.s32.totalorder %s158, %s172
      %p174 = scmp.eq.s32.totalorder %s22, 0
      %p175 = por %p173, %p174
      %s176 = ssub.s32 %s16, %s23
      %p177 = scmp.eq.s32.totalorder %s176, 0
      %s179 = sadd.s32 %s178, 1
      %s180 = scalar_select %p177, %s178, %s179
      %p183 = pneg %p177
      %p184 = scmp.eq.s32.totalorder %s16, 1
      %p185 = por %p183, %p184
      %p186 = scmp.ne.s32.totalorder %s178, %s181
      %p187 = scmp.eq.s32.totalorder %s16, 0
      %p188 = por %p186, %p187
      %p189 = scmp.ne.s32.totalorder %s178, %s181
      %p190 = scmp.eq.s32.totalorder %s21, 1
      %p191 = por %p189, %p190
      %p192 = scmp.ne.s32.totalorder %s181, %s182
      %p193 = scmp.eq.s32.totalorder %s21, 0
      %p194 = por %p192, %p193
      %p195 = scmp.ne.s32.totalorder %s181, %s182
      %p196 = scmp.eq.s32.totalorder %s22, 1
      %p197 = por %p195, %p196
      %p199 = scmp.ne.s32.totalorder %s182, %s198
      %p200 = scmp.eq.s32.totalorder %s22, 0
      %p201 = por %p199, %p200
      %p202 = scmp.le.s32.totalorder 1, %s16
      %p203 = scmp.lt.s32.totalorder %s16, 3
      %p204 = pnand %p202, %p203
      %p205 = pneg %p204
      // Predicated region
      $region9: #{grid2rgb_forward.1} parent=5 // pred_check
        _
      $region10: #{grid2rgb_forward.1} parent=5 // pred_check_branch
        %207 = sbr.rel (%p204) target = $region12
      $region11: #{grid2rgb_forward.1} parent=5 // pred_region
        %s208 = ssub.s32 %s16, 1
        // Predicated region
        $region13: #{grid2rgb_forward.1} parent=11 // pred_check
          %p209 = pneg %p63
        $region14: #{grid2rgb_forward.1} parent=11 // pred_check_branch
          %211 = sbr.rel (%p209) target = $region16
        $region15: #{grid2rgb_forward.1} parent=11 // pred_region
          _
        $region16: #{grid2rgb_forward.1} parent=11 // pred_fallthru
          _
        // Predicated region
        $region17: #{grid2rgb_forward.1} parent=11 // pred_check
          %p212 = pneg %p84
        $region18: #{grid2rgb_forward.1} parent=11 // pred_check_branch
          %214 = sbr.rel (%p212) target = $region20
        $region19: #{grid2rgb_forward.1} parent=11 // pred_region
          _
        $region20: #{grid2rgb_forward.1} parent=11 // pred_fallthru
          _
        // Predicated region
        $region21: #{grid2rgb_forward.1} parent=11 // pred_check
          %p215 = pneg %p105
        $region22: #{grid2rgb_forward.1} parent=11 // pred_check_branch
          %217 = sbr.rel (%p215) target = $region24
        $region23: #{grid2rgb_forward.1} parent=11 // pred_region
          _
        $region24: #{grid2rgb_forward.1} parent=11 // pred_fallthru
          _
        // Predicated region
        $region25: #{grid2rgb_forward.1} parent=11 // pred_check
          %p218 = pneg %p126
        $region26: #{grid2rgb_forward.1} parent=11 // pred_check_branch
          %220 = sbr.rel (%p218) target = $region28
        $region27: #{grid2rgb_forward.1} parent=11 // pred_region
          _
        $region28: #{grid2rgb_forward.1} parent=11 // pred_fallthru
          _
        // Predicated region
        $region29: #{grid2rgb_forward.1} parent=11 // pred_check
          %p221 = pneg %p147
        $region30: #{grid2rgb_forward.1} parent=11 // pred_check_branch
          %223 = sbr.rel (%p221) target = $region32
        $region31: #{grid2rgb_forward.1} parent=11 // pred_region
          _
        $region32: #{grid2rgb_forward.1} parent=11 // pred_fallthru
          _
        // Predicated region
        $region33: #{grid2rgb_forward.1} parent=11 // pred_check
          %p224 = pneg %p168
        $region34: #{grid2rgb_forward.1} parent=11 // pred_check_branch
          %226 = sbr.rel (%p224) target = $region36
        $region35: #{grid2rgb_forward.1} parent=11 // pred_region
          _
        $region36: #{grid2rgb_forward.1} parent=11 // pred_fallthru
          _
      $region12: #{grid2rgb_forward.1} parent=5 // pred_fallthru
        _
      %p227 = scmp.lt.s32.totalorder %s16, 2
      // Predicated region
      $region37: #{grid2rgb_forward.1} parent=5 // pred_check
        %p228 = pneg %p227
      $region38: #{grid2rgb_forward.1} parent=5 // pred_check_branch
        %230 = sbr.rel (%p228) target = $region40
      $region39: #{grid2rgb_forward.1} parent=5 // pred_region
        // Predicated region
        $region41: #{grid2rgb_forward.1} parent=39 // pred_check
          %p231 = pneg %p36
        $region42: #{grid2rgb_forward.1} parent=39 // pred_check_branch
          %233 = sbr.rel (%p231) target = $region44
        $region43: #{grid2rgb_forward.1} parent=39 // pred_region
          %s234 = sand.u32 %s26, 1
          %s235 = sand.u32 %s26, 1
          %s236 = smul.addr %s235, 12
          %s237 = scalar_lea.vmem [#allocation2], %s236
          %s238 = smul.addr %s16, 4
          %s239 = scalar_lea.vmem %s0, %s238
          // Predicated region
          $region45: #{grid2rgb_forward.1} parent=43 // pred_check
            _
          $region46: #{grid2rgb_forward.1} parent=43 // pred_check_branch
            %241 = sbr.rel (0) target = $region48
          $region47: #{grid2rgb_forward.1} parent=43 // pred_region
            // Predicated region
            $region49: #{grid2rgb_forward.1} parent=47 // pred_check
              _
            $region50: #{grid2rgb_forward.1} parent=47 // pred_check_branch
              %243 = sbr.rel target = $region52
            $region51: #{grid2rgb_forward.1} parent=47 // pred_region
              // Predicated region
              $region64: #{grid2rgb_forward.1} parent=51 // pred_check
                _
              $region65: #{grid2rgb_forward.1} parent=51 // pred_check_branch
                %262 = sbr.rel (0) target = $region67
              $region66: #{grid2rgb_forward.1} parent=51 // pred_region
                loop: start=0, step=1, limit=1
                $region68: #{grid2rgb_forward.1} parent=66 // loop_pre_header
                  _
                $region69: #{grid2rgb_forward.1} parent=66 // loop_header
                  %s264 = sphi 0, %s268
                  %p265 = scmp.ge.s32.totalorder %s264, 1
                  %s269 = sphi %s239, %s239
                  %s270 = sphi %s237, %s237
                $region70: #{grid2rgb_forward.1} parent=66 // loop_header_branch
                  %267 = sbr.rel (%p265) target = $region74
                $region71: #{grid2rgb_forward.1} parent=66 // loop_body
                  _
                $region72: #{grid2rgb_forward.1} parent=66 // loop_footer
                  %s268 = sadd.s32 1, %s264
                $region73: #{grid2rgb_forward.1} parent=66 // loop_footer_branch
                  %263 = sbr.rel target = $region69
                $region74: #{grid2rgb_forward.1} parent=66 // loop_exit
                  _
                loop: start=0, step=1, limit=1
                $region75: #{grid2rgb_forward.1} parent=66 // loop_pre_header
                  _
                $region76: #{grid2rgb_forward.1} parent=66 // loop_header
                  %s273 = sphi 0, %s277
                  %p274 = scmp.ge.s32.totalorder %s273, 1
                  %s278 = sphi %s239, %s239
                  %s279 = sphi %s237, %s237
                $region77: #{grid2rgb_forward.1} parent=66 // loop_header_branch
                  %276 = sbr.rel (%p274) target = $region81
                $region78: #{grid2rgb_forward.1} parent=66 // loop_body
                  %v280 = vld [vmem:[%s278] sm:$0xf]
                  %281 = vst [vmem:[%s279] sm:$0xf] %v280
                  %v282 = vld [vmem:[%s278 + $0x8] sm:$0xf]
                  %283 = vst [vmem:[%s279 + $0x4] sm:$0xf] %v282
                  %v284 = vld [vmem:[%s278 + $0x10] sm:$0xf]
                  %285 = vst [vmem:[%s279 + $0x8] sm:$0xf] %v284
                $region79: #{grid2rgb_forward.1} parent=66 // loop_footer
                  %s277 = sadd.s32 1, %s273
                $region80: #{grid2rgb_forward.1} parent=66 // loop_footer_branch
                  %272 = sbr.rel target = $region76
                $region81: #{grid2rgb_forward.1} parent=66 // loop_exit
                  _
              $region67: #{grid2rgb_forward.1} parent=51 // pred_fallthru
                _
            $region52: #{grid2rgb_forward.1} parent=47 // pred_fallthru
              _
            // Predicated region
            $region53: #{grid2rgb_forward.1} parent=47 // pred_check
              _
            $region54: #{grid2rgb_forward.1} parent=47 // pred_check_branch
              %245 = sbr.rel (0) target = $region56
            $region55: #{grid2rgb_forward.1} parent=47 // pred_region
              loop: start=0, step=1, limit=1
              $region57: #{grid2rgb_forward.1} parent=55 // loop_pre_header
                _
              $region58: #{grid2rgb_forward.1} parent=55 // loop_header
                %s248 = sphi 0, %s252
                %p249 = scmp.ge.s32.totalorder %s248, 1
                %s253 = sphi %s239, %s239
                %s254 = sphi %s237, %s237
              $region59: #{grid2rgb_forward.1} parent=55 // loop_header_branch
                %251 = sbr.rel (%p249) target = $region63
              $region60: #{grid2rgb_forward.1} parent=55 // loop_body
                %v255 = vld [vmem:[%s253] sm:$0xf]
                %256 = vst [vmem:[%s254] sm:$0xf] %v255
                %v257 = vld [vmem:[%s253 + $0x8] sm:$0xf]
                %258 = vst [vmem:[%s254 + $0x4] sm:$0xf] %v257
                %v259 = vld [vmem:[%s253 + $0x10] sm:$0xf]
                %260 = vst [vmem:[%s254 + $0x8] sm:$0xf] %v259
              $region61: #{grid2rgb_forward.1} parent=55 // loop_footer
                %s252 = sadd.s32 1, %s248
              $region62: #{grid2rgb_forward.1} parent=55 // loop_footer_branch
                %247 = sbr.rel target = $region58
              $region63: #{grid2rgb_forward.1} parent=55 // loop_exit
                _
            $region56: #{grid2rgb_forward.1} parent=47 // pred_fallthru
              _
          $region48: #{grid2rgb_forward.1} parent=43 // pred_fallthru
            _
          %286 = vnop
        $region44: #{grid2rgb_forward.1} parent=39 // pred_fallthru
          _
      $region40: #{grid2rgb_forward.1} parent=5 // pred_fallthru
        _
      %p287 = scmp.le.s32.totalorder 1, %s16
      %p288 = scmp.lt.s32.totalorder %s16, 3
      %p289 = pnand %p287, %p288
      %p290 = pneg %p289
      // Predicated region
      $region82: #{grid2rgb_forward.1} parent=5 // pred_check
        _
      $region83: #{grid2rgb_forward.1} parent=5 // pred_check_branch
        %292 = sbr.rel (%p289) target = $region85
      $region84: #{grid2rgb_forward.1} parent=5 // pred_region
        %s293 = ssub.s32 %s16, 1
        %s294 = sand.u32 %s29, 1
        %s295 = sand.u32 %s29, 1
        %s296 = smul.addr %s295, 12
        %s297 = scalar_lea.vmem [#allocation2], %s296
        // Predicated region
        $region86: #{grid2rgb_forward.1} parent=84 // pred_check
          %p298 = pneg %p42
        $region87: #{grid2rgb_forward.1} parent=84 // pred_check_branch
          %300 = sbr.rel (%p298) target = $region89
        $region88: #{grid2rgb_forward.1} parent=84 // pred_region
          _
        $region89: #{grid2rgb_forward.1} parent=84 // pred_fallthru
          _
        %s301 = sand.u32 %s29, 1
        %s302 = sand.u32 %s29, 1
        %s303 = smul.addr %s302, 12
        %s304 = scalar_lea.vmem [#allocation2], %s303
        %p305 = pneg %p42
        %p306 = pneg %p39
        %p307 = pneg %p63
        %p308 = pneg %p60
        %p309 = pneg %p84
        %p310 = pneg %p81
        %p311 = pneg %p105
        %p312 = pneg %p102
        %p313 = pneg %p126
        %p314 = pneg %p123
        %p315 = pneg %p147
        %p316 = pneg %p144
        %p317 = pneg %p168
        %p318 = pneg %p165
        %p319 = pneg %p194
        %p320 = pneg %p191
        %s321 = sand.u32 %s181, 1
        %s322 = scalar_lea.sflag [#allocation4], %s321
        %s323 = sand.u32 %s181, 1
        %s324 = smul.addr %s323, 4
        %s325 = scalar_lea.vmem [#allocation3], %s324
        %v327 = vld [vmem:[%s1] sm:$0xf]
        %v328 = vld [vmem:[%s1 + $0x4] sm:$0xf]
        %v329 = vld [vmem:[%s1 + $0x8] sm:$0xf]
        %v330 = vld [vmem:[%s1 + $0xc] sm:$0xf]
        %v331 = vld [vmem:[%s297] sm:$0xf]
        %v332 = vld [vmem:[%s297 + $0x4] sm:$0xf]
        %v333 = vld [vmem:[%s297 + $0x8] sm:$0x1]
        %v334 = vld [vmem:[%s2] sm:$0xff]
        %v335 = vld [vmem:[%s2 + $0x8] sm:$0xff]
        %v336 = vld [vmem:[%s2 + $0x10] sm:$0xff]
        %v337 = vld [vmem:[%s2 + $0x18] sm:$0xff]
        %339 = vset.pattern.permute.xlu0 0
        %340 = vperm.xlu0 %339, %v334
        %v341 = vpop.permute.xlu0 %340
        %344 = vset.pattern.permute.xlu0 0
        %345 = vperm.xlu0 %344, %v335
        %v346 = vpop.permute.xlu0 %345
        %349 = vset.pattern.permute.xlu0 0
        %350 = vperm.xlu0 %349, %v336
        %v351 = vpop.permute.xlu0 %350
        %354 = vset.pattern.permute.xlu0 0
        %355 = vperm.xlu0 %354, %v337
        %v356 = vpop.permute.xlu0 %355
        %v362 = vunpack.c.l.b16 %v327
        %v363 = vunpack.c.l.b16 %v328
        %v364 = vunpack.c.l.b16 %v329
        %v365 = vunpack.c.l.b16 %v330
        %v366 = vpack.c.b16 %v363, %v362
        %v367 = vpack.c.b16 %v365, %v364
        %v371 = vunpack.c.l.b16 %v331
        %v372 = vunpack.c.l.b16 %v332
        %v373 = vunpack.c.l.b16 %v333
        %v374 = vpack.c.b16 %v372, %v371
        %v375 = vpack.c.b16 %v373, %v373
        %vm377 = vcmask 146432
        %v379 = vsel %vm377, %v366, 0
        %v382 = vsel %vm377, %v367, 0
        %vm384 = vcmask 1040384
        %v386 = vsel %vm384, %v375, 0
        %388 = vmatprep.subr.bf16.mxu0 0
        %389 = vmatpush1.bf16.msra.mxu0 %v374
        %390 = vmatprep.subr.bf16.mxu0 0
        %391 = vmatpush1.bf16.msra.mxu0 %v386
        %392 = vmatprep.subr.bf16.mxu0 0
        %393 = vmatpush1.bf16.msra.mxu0 0
        %394 = vmatprep.subr.bf16.mxu0 0
        %395 = vmatpush1.bf16.msra.mxu0 0
        %396 = vmatprep.subr.bf16.mxu0 0
        %397 = vmatpush1.bf16.msra.mxu0 0
        %398 = vmatprep.subr.bf16.mxu0 0
        %399 = vmatpush1.bf16.msra.mxu0 0
        %400 = vmatprep.subr.bf16.mxu0 0
        %401 = vmatpush1.bf16.msra.mxu0 0
        %402 = vmatprep.subr.bf16.mxu0 0
        %403 = vmatpush1.bf16.msra.mxu0 0
        %404 = vmatprep.subr.bf16.mxu0 0
        %405 = vmatpush1.bf16.msra.mxu0 0
        %406 = vmatprep.subr.bf16.mxu0 0
        %407 = vmatpush1.bf16.msra.mxu0 0
        %408 = vmatprep.subr.bf16.mxu0 0
        %409 = vmatpush1.bf16.msra.mxu0 0
        %410 = vmatprep.subr.bf16.mxu0 0
        %411 = vmatpush1.bf16.msra.mxu0 0
        %412 = vmatprep.subr.bf16.mxu0 0
        %413 = vmatpush1.bf16.msra.mxu0 0
        %414 = vmatprep.subr.bf16.mxu0 0
        %415 = vmatpush1.bf16.msra.mxu0 0
        %416 = vmatprep.subr.bf16.mxu0 0
        %417 = vmatpush1.bf16.msra.mxu0 0
        %418 = vmatprep.subr.bf16.mxu0 0
        %419 = vmatpush1.bf16.msra.mxu0 0
        %420 = vmatprep.mubr.bf16.mxu0 0
        %421 = vmatmul.mubr.bf16.gmra.mrb[0].mxu0 %v379
        %v422 = vpop.f32.mrb[0].mxu0
        %v423 = vadd.f32 %v341, %v422
        %v424 = vpop.f32.mrb[0].mxu0
        %v425 = vpop.f32.mrb[0].mxu0
        %v426 = vadd.f32 %v346, %v425
        %v427 = vpop.f32.mrb[0].mxu0
        %428 = vmatprep.mubr.bf16.mxu0 0
        %429 = vmatmul.mubr.bf16.gmra.mrb[0].mxu0 %v382
        %v430 = vpop.f32.mrb[0].mxu0
        %v431 = vadd.f32 %v351, %v430
        %v432 = vpop.f32.mrb[0].mxu0
        %v433 = vpop.f32.mrb[0].mxu0
        %v434 = vadd.f32 %v356, %v433
        %v435 = vpop.f32.mrb[0].mxu0
        %436 = vdwg.mxu0
        %v437 = vmax.f32 %v423, 0.0
        %v438 = vmax.f32 %v426, 0.0
        %v439 = vmax.f32 %v431, 0.0
        %v440 = vmax.f32 %v434, 0.0
        %v441 = vld [vmem:[%s3] sm:$0xf]
        %v442 = vld [vmem:[%s3 + $0x4] sm:$0xf]
        %v443 = vld [vmem:[%s3 + $0x8] sm:$0xf]
        %v444 = vld [vmem:[%s3 + $0xc] sm:$0xf]
        %v445 = vpack.c.bf16 %v438, %v437
        %v446 = vpack.c.bf16 %v440, %v439
        %v447 = vld [vmem:[%s4] sm:$0xff]
        %v448 = vld [vmem:[%s4 + $0x8] sm:$0xff]
        %v449 = vld [vmem:[%s4 + $0x10] sm:$0xff]
        %v450 = vld [vmem:[%s4 + $0x18] sm:$0xff]
        %452 = vset.pattern.permute.xlu0 0
        %453 = vperm.xlu0 %452, %v447
        %v454 = vpop.permute.xlu0 %453
        %457 = vset.pattern.permute.xlu0 0
        %458 = vperm.xlu0 %457, %v448
        %v459 = vpop.permute.xlu0 %458
        %462 = vset.pattern.permute.xlu0 0
        %463 = vperm.xlu0 %462, %v449
        %v464 = vpop.permute.xlu0 %463
        %467 = vset.pattern.permute.xlu0 0
        %468 = vperm.xlu0 %467, %v450
        %v469 = vpop.permute.xlu0 %468
        %v475 = vunpack.c.l.b16 %v441
        %v476 = vunpack.c.l.b16 %v442
        %v477 = vunpack.c.l.b16 %v443
        %v478 = vunpack.c.l.b16 %v444
        %v479 = vpack.c.b16 %v476, %v475
        %v480 = vpack.c.b16 %v478, %v477
        %vm481 = vcmask 261120
        %v483 = vsel %vm481, %v479, 0
        %v486 = vsel %vm481, %v480, 0
        %488 = vmatprep.subr.bf16.mxu0 0
        %489 = vmatpush1.bf16.msra.mxu0 %v445
        %490 = vmatprep.subr.bf16.mxu0 0
        %491 = vmatpush1.bf16.msra.mxu0 %v446
        %492 = vmatprep.subr.bf16.mxu0 0
        %493 = vmatpush1.bf16.msra.mxu0 0
        %494 = vmatprep.subr.bf16.mxu0 0
        %495 = vmatpush1.bf16.msra.mxu0 0
        %496 = vmatprep.subr.bf16.mxu0 0
        %497 = vmatpush1.bf16.msra.mxu0 0
        %498 = vmatprep.subr.bf16.mxu0 0
        %499 = vmatpush1.bf16.msra.mxu0 0
        %500 = vmatprep.subr.bf16.mxu0 0
        %501 = vmatpush1.bf16.msra.mxu0 0
        %502 = vmatprep.subr.bf16.mxu0 0
        %503 = vmatpush1.bf16.msra.mxu0 0
        %504 = vmatprep.subr.bf16.mxu0 0
        %505 = vmatpush1.bf16.msra.mxu0 0
        %506 = vmatprep.subr.bf16.mxu0 0
        %507 = vmatpush1.bf16.msra.mxu0 0
        %508 = vmatprep.subr.bf16.mxu0 0
        %509 = vmatpush1.bf16.msra.mxu0 0
        %510 = vmatprep.subr.bf16.mxu0 0
        %511 = vmatpush1.bf16.msra.mxu0 0
        %512 = vmatprep.subr.bf16.mxu0 0
        %513 = vmatpush1.bf16.msra.mxu0 0
        %514 = vmatprep.subr.bf16.mxu0 0
        %515 = vmatpush1.bf16.msra.mxu0 0
        %516 = vmatprep.subr.bf16.mxu0 0
        %517 = vmatpush1.bf16.msra.mxu0 0
        %518 = vmatprep.subr.bf16.mxu0 0
        %519 = vmatpush1.bf16.msra.mxu0 0
        %520 = vmatprep.mubr.bf16.mxu0 0
        %521 = vmatmul.mubr.bf16.gmra.mrb[0].mxu0 %v483
        %v522 = vpop.f32.mrb[0].mxu0
        %v523 = vadd.f32 %v454, %v522
        %v524 = vpop.f32.mrb[0].mxu0
        %v525 = vpop.f32.mrb[0].mxu0
        %v526 = vadd.f32 %v459, %v525
        %v527 = vpop.f32.mrb[0].mxu0
        %528 = vmatprep.mubr.bf16.mxu0 0
        %529 = vmatmul.mubr.bf16.gmra.mrb[0].mxu0 %v486
        %v530 = vpop.f32.mrb[0].mxu0
        %v531 = vadd.f32 %v464, %v530
        %v532 = vpop.f32.mrb[0].mxu0
        %v533 = vpop.f32.mrb[0].mxu0
        %v534 = vadd.f32 %v469, %v533
        %v535 = vpop.f32.mrb[0].mxu0
        %536 = vdwg.mxu0
        %v537 = vmax.f32 %v523, 0.0
        %v538 = vmax.f32 %v526, 0.0
        %v539 = vmax.f32 %v531, 0.0
        %v540 = vmax.f32 %v534, 0.0
        %v541 = vld [vmem:[%s5] sm:$0x3]
        %v542 = vpack.c.bf16 %v538, %v537
        %v543 = vpack.c.bf16 %v540, %v539
        %v544 = vld [vmem:[%s6] sm:$0x7]
        %546 = vset.pattern.permute.xlu0 0
        %547 = vperm.xlu0 %546, %v544
        %v548 = vpop.permute.xlu0 %547
        %v551 = vsel %vm481, %v541, 0
        %553 = vmatprep.subr.bf16.mxu0 0
        %554 = vmatpush1.bf16.msra.mxu0 %v542
        %555 = vmatprep.subr.bf16.mxu0 0
        %556 = vmatpush1.bf16.msra.mxu0 %v543
        %557 = vmatprep.subr.bf16.mxu0 0
        %558 = vmatpush1.bf16.msra.mxu0 0
        %559 = vmatprep.subr.bf16.mxu0 0
        %560 = vmatpush1.bf16.msra.mxu0 0
        %561 = vmatprep.subr.bf16.mxu0 0
        %562 = vmatpush1.bf16.msra.mxu0 0
        %563 = vmatprep.subr.bf16.mxu0 0
        %564 = vmatpush1.bf16.msra.mxu0 0
        %565 = vmatprep.subr.bf16.mxu0 0
        %566 = vmatpush1.bf16.msra.mxu0 0
        %567 = vmatprep.subr.bf16.mxu0 0
        %568 = vmatpush1.bf16.msra.mxu0 0
        %569 = vmatprep.subr.bf16.mxu0 0
        %570 = vmatpush1.bf16.msra.mxu0 0
        %571 = vmatprep.subr.bf16.mxu0 0
        %572 = vmatpush1.bf16.msra.mxu0 0
        %573 = vmatprep.subr.bf16.mxu0 0
        %574 = vmatpush1.bf16.msra.mxu0 0
        %575 = vmatprep.subr.bf16.mxu0 0
        %576 = vmatpush1.bf16.msra.mxu0 0
        %577 = vmatprep.subr.bf16.mxu0 0
        %578 = vmatpush1.bf16.msra.mxu0 0
        %579 = vmatprep.subr.bf16.mxu0 0
        %580 = vmatpush1.bf16.msra.mxu0 0
        %581 = vmatprep.subr.bf16.mxu0 0
        %582 = vmatpush1.bf16.msra.mxu0 0
        %583 = vmatprep.subr.bf16.mxu0 0
        %584 = vmatpush1.bf16.msra.mxu0 0
        %585 = vmatprep.mubr.bf16.mxu0 0
        %586 = vmatmul.mubr.bf16.gmra.mrb[0].mxu0 %v551
        %v587 = vpop.f32.mrb[0].mxu0
        %v588 = vadd.f32 %v548, %v587
        %v589 = vpop.f32.mrb[0].mxu0
        %v590 = vpop.f32.mrb[0].mxu0
        %v591 = vpop.f32.mrb[0].mxu0
        %592 = vdwg.mxu0
        %593 = vst [vmem:[%s325] sm:$0x7] %v588
        %s594 = sand.u32 %s181, 1
        %s595 = scalar_lea.sflag [#allocation4], %s594
        %s596 = sand.u32 %s181, 1
        %s597 = smul.addr %s596, 4
        %s598 = scalar_lea.vmem [#allocation3], %s597
        // Predicated region
        $region90: #{grid2rgb_forward.1} parent=84 // pred_check
          %p599 = pneg %p191
        $region91: #{grid2rgb_forward.1} parent=84 // pred_check_branch
          %601 = sbr.rel (%p599) target = $region93
        $region92: #{grid2rgb_forward.1} parent=84 // pred_region
          %s603 = ssub.s32 64, 64
          %604 = vsyncadd %s595, %s603
          %s605 = smul.addr %s21, 64
          %s606 = scalar_lea.hbm %s7, %s605
          %s608 = sshll.u32 %s598, 4
          %s609 = int_to_ptr.vmem [resolvable:$true] %s608
          %611 = dma.vmem_to_hbm [thread:$0]  %s609, 64, %s606, %s595
        $region93: #{grid2rgb_forward.1} parent=84 // pred_fallthru
          _
      $region85: #{grid2rgb_forward.1} parent=5 // pred_fallthru
        _
      %p612 = scmp.le.s32.totalorder 2, %s16
      // Predicated region
      $region94: #{grid2rgb_forward.1} parent=5 // pred_check
        %p613 = pneg %p612
      $region95: #{grid2rgb_forward.1} parent=5 // pred_check_branch
        %615 = sbr.rel (%p613) target = $region97
      $region96: #{grid2rgb_forward.1} parent=5 // pred_region
        %s616 = ssub.s32 %s16, 2
        // Predicated region
        $region98: #{grid2rgb_forward.1} parent=96 // pred_check
          %p617 = pneg %p197
        $region99: #{grid2rgb_forward.1} parent=96 // pred_check_branch
          %619 = sbr.rel (%p617) target = $region101
        $region100: #{grid2rgb_forward.1} parent=96 // pred_region
          %s620 = sand.u32 %s182, 1
          %s621 = scalar_lea.sflag [#allocation4], %s620
          %s622 = sand.u32 %s182, 1
          %s623 = smul.addr %s622, 4
          %s624 = scalar_lea.vmem [#allocation3], %s623
          %625 = dma.done %s621, 64
        $region101: #{grid2rgb_forward.1} parent=96 // pred_fallthru
          _
      $region97: #{grid2rgb_forward.1} parent=5 // pred_fallthru
        _
    $region6: #{grid2rgb_forward.1} parent=1 // loop_footer
      %s20 = sadd.s32 1, %s16
    $region7: #{grid2rgb_forward.1} parent=1 // loop_footer_branch
      %15 = sbr.rel target = $region3
    $region8: #{grid2rgb_forward.1} parent=1 // loop_exit
      _
    %626 = vsyncpa [#allocation4], 1
    %s627 = scalar_lea.sflag [#allocation4], 1
    %628 = vsyncpa %s627, 1

</llo_original>
